<compile_context>
chip_gen: v5e
topology: v5e:2x2
jax: 0.10.0
libtpu: 0.0.40
codegen_flags: <defaults>
</compile_context>

<pallas_src>
import functools

import jax
import jax.numpy as jnp
from jax import lax
from jax.experimental import pallas as pl
from jax.experimental.pallas import tpu as pltpu

_LANES = 128


def _round_up(x, q):
    return ((x + q - 1) // q) * q


def _class_loss_kernel(pred_ref, tgt_ref, out_ref, acc_ref, *,
                       pos_weight, row_tile, tiles_per_core,
                       n_full_rows, rem_lanes, first_dirty_tile, needs_mask):
    c = pl.program_id(0)   # per-core "parallel" axis
    i = pl.program_id(1)   # sequential reduction axis

    @pl.when(i == 0)
    def _():
        acc_ref[...] = jnp.zeros_like(acc_ref)

    x = pred_ref[...].astype(jnp.float32)
    y = tgt_ref[...].astype(jnp.float32)

    # Numerically stable softplus(-x) = max(-x, 0) + log1p(exp(-|x|))
    sp_neg_x = jnp.maximum(-x, 0.0) + jnp.log1p(jnp.exp(-jnp.abs(x)))

    # Pos-weighted BCE with logits (matches torch.nn.BCEWithLogitsLoss):
    #   l = (1 - y) * x + (1 + (p - 1) * y) * softplus(-x)
    loss_elem = (1.0 - y) * x + (1.0 + (pos_weight - 1.0) * y) * sp_neg_x

    if needs_mask:
        tile_idx = c * tiles_per_core + i

        # Clean tiles: pure unmasked accumulate (the common case).
        @pl.when(tile_idx < first_dirty_tile)
        def _():
            acc_ref[...] += jnp.sum(loss_elem, axis=0, keepdims=True)

        # Tiles touching (or past) the data boundary: select-based mask so that
        # out-of-bounds garbage / lane padding contributes exactly 0.
        @pl.when(tile_idx >= first_dirty_tile)
        def _():
            row_ids = lax.broadcasted_iota(jnp.int32, (row_tile, _LANES), 0)
            grow = tile_idx * row_tile + row_ids        # global 128-lane row index
            mask = grow < n_full_rows
            if rem_lanes:
                lane_ids = lax.broadcasted_iota(jnp.int32, (row_tile, _LANES), 1)
                mask = jnp.logical_or(
                    mask,
                    jnp.logical_and(grow == n_full_rows, lane_ids < rem_lanes))
            masked = jnp.where(mask, loss_elem, 0.0)    # select: garbage never propagates
            acc_ref[...] += jnp.sum(masked, axis=0, keepdims=True)
    else:
        acc_ref[...] += jnp.sum(loss_elem, axis=0, keepdims=True)

    # Lane-dense per-core partial; full cross-lane reduce + scaling happen in the wrapper.
    @pl.when(i == pl.num_programs(1) - 1)
    def _():
        out_ref[...] = acc_ref[...]


def class_loss(pred, target, num_classes=80, *, loss_weight=0.5, pos_weight=1.0,
               max_row_tile=4096, num_partials=1):
    """loss_weight * (num_classes / 80) * mean(pos-weighted BCEWithLogits(pred, target)).

    num_partials=1 for single-TensorCore chips (v5e/v6e); use 2 on v7x.
    max_row_tile can be raised to 8192 on v7x (high HBM bandwidth) if desired.
    """
    assert pred.shape == target.shape
    numel = int(pred.size)
    assert numel > 0
    scale = float(loss_weight) * (float(num_classes) / 80.0) / float(numel)

    # Lane-dense view: flatten; pad ONLY the <128-element lane remainder (never whole
    # tiles / the whole array).  The reshape itself is free for contiguous inputs.
    pred_flat = pred.reshape(-1)
    tgt_flat = target.reshape(-1)
    rem_lanes = numel % _LANES
    if rem_lanes:
        lane_pad = _LANES - rem_lanes
        pred_flat = jnp.pad(pred_flat, (0, lane_pad))
        tgt_flat = jnp.pad(tgt_flat, (0, lane_pad))
    n_rows_arr = pl.cdiv(numel, _LANES)
    pred2 = pred_flat.reshape(n_rows_arr, _LANES)
    tgt2 = tgt_flat.reshape(n_rows_arr, _LANES)

    # Sublane tiling quantum: f32 -> 8, bf16 -> 16, int8/fp8 -> 32.
    quantum = max(8, 32 // pred.dtype.itemsize, 32 // target.dtype.itemsize)
    row_tile = min(_round_up(n_rows_arr, quantum),
                   max(quantum, (int(max_row_tile) // quantum) * quantum))

    tiles_total = pl.cdiv(n_rows_arr, row_tile)
    num_partials_eff = max(1, min(int(num_partials), tiles_total))
    tiles_per_core = pl.cdiv(tiles_total, num_partials_eff)

    n_full_rows = numel // _LANES
    first_dirty_tile = n_full_rows // row_tile
    covered = num_partials_eff * tiles_per_core * row_tile * _LANES
    needs_mask = covered != numel

    # Input index map; clamp when the per-core rounding over-provisions tiles so the DMA
    # never starts fully out of bounds (those tiles are fully masked in-kernel anyway).
    if num_partials_eff * tiles_per_core == tiles_total:
        def in_index(c, i):
            return (c * tiles_per_core + i, 0)
    else:
        last_tile = tiles_total - 1

        def in_index(c, i):
            return (jnp.minimum(c * tiles_per_core + i, last_tile), 0)

    kernel = functools.partial(
        _class_loss_kernel,
        pos_weight=float(pos_weight),
        row_tile=row_tile,
        tiles_per_core=tiles_per_core,
        n_full_rows=n_full_rows,
        rem_lanes=rem_lanes,
        first_dirty_tile=first_dirty_tile,
        needs_mask=needs_mask,
    )

    cost = pl.CostEstimate(
        flops=10 * numel,
        transcendentals=2 * numel,
        bytes_accessed=numel * (pred.dtype.itemsize + target.dtype.itemsize)
        + num_partials_eff * _LANES * 4,
    )

    partials = pl.pallas_call(
        kernel,
        out_shape=jax.ShapeDtypeStruct((num_partials_eff, _LANES), jnp.float32),
        grid_spec=pltpu.PrefetchScalarGridSpec(
            num_scalar_prefetch=0,
            grid=(num_partials_eff, tiles_per_core),
            in_specs=[
                pl.BlockSpec((row_tile, _LANES), in_index),
                pl.BlockSpec((row_tile, _LANES), in_index),
            ],
            out_specs=pl.BlockSpec((1, _LANES), lambda c, i: (c, 0)),
            scratch_shapes=[pltpu.VMEM((1, _LANES), jnp.float32)],
        ),
        compiler_params=pltpu.CompilerParams(
            dimension_semantics=("parallel", "arbitrary"),
            vmem_limit_bytes=32 * 1024 * 1024),
        cost_estimate=cost,
    )(pred2, tgt2)

    return jnp.sum(partials) * scale


def _reference_class_loss(pred, target, num_classes=80, *, loss_weight=0.5,
                          pos_weight=1.0):
    x = pred.astype(jnp.float32)
    y = target.astype(jnp.float32)
    sp = jnp.maximum(-x, 0.0) + jnp.log1p(jnp.exp(-jnp.abs(x)))
    l = (1.0 - y) * x + (1.0 + (pos_weight - 1.0) * y) * sp
    return loss_weight * (num_classes / 80.0) * jnp.mean(l)


if __name__ == "__main__":
    key = jax.random.PRNGKey(0)
    k1, k2, k3, k4, k5, k6 = jax.random.split(key, 6)
    num_classes = 80

    # Case 1: numel % 128 == 0 and rows quantum-aligned -> unmasked single-tile path.
    pred = jax.random.normal(k1, (64, num_classes), dtype=jnp.float32)
    target = (jax.random.uniform(k2, (64, num_classes)) > 0.9).astype(jnp.float32)
    loss = class_loss(pred, target, num_classes=num_classes,
                      loss_weight=0.5, pos_weight=1.0)
    loss = jax.block_until_ready(loss)
    ref = _reference_class_loss(pred, target, num_classes=num_classes,
                                loss_weight=0.5, pos_weight=1.0)
    assert jnp.allclose(loss, ref, rtol=1e-5, atol=1e-6), (loss, ref)

    # Case 2: numel % 128 != 0 (lane-remainder pad + gated tail mask), pos_weight != 1.
    pred_b = jax.random.normal(k3, (21, num_classes), dtype=jnp.float32)
    target_b = (jax.random.uniform(k4, (21, num_classes)) > 0.8).astype(jnp.float32)
    loss_b = class_loss(pred_b, target_b, num_classes=num_classes,
                        loss_weight=0.5, pos_weight=2.0)
    loss_b = jax.block_until_ready(loss_b)
    ref_b = _reference_class_loss(pred_b, target_b, num_classes=num_classes,
                                  loss_weight=0.5, pos_weight=2.0)
    assert jnp.allclose(loss_b, ref_b, rtol=1e-5, atol=1e-6), (loss_b, ref_b)

    # Case 3: multi-tile grid with a ragged (unpadded) last block, two per-core partials
    # (clamped index map + clean/dirty pl.when gating), pos_weight != 1.
    pred_c = jax.random.normal(k5, (260, 128), dtype=jnp.float32)
    target_c = (jax.random.uniform(k6, (260, 128)) > 0.8).astype(jnp.float32)
    loss_c = class_loss(pred_c, target_c, num_classes=num_classes,
                        loss_weight=0.5, pos_weight=1.5,
                        max_row_tile=128, num_partials=2)
    loss_c = jax.block_until_ready(loss_c)
    ref_c = _reference_class_loss(pred_c, target_c, num_classes=num_classes,
                                  loss_weight=0.5, pos_weight=1.5)
    assert jnp.allclose(loss_c, ref_c, rtol=1e-5, atol=1e-6), (loss_c, ref_c)

    print("KERNEL_OK")
</pallas_src>

<mosaic_0001>
module attributes {stable_mosaic.version = 11 : i64} {
  func.func @_class_loss_kernel(%arg0: i32, %arg1: i32, %arg2: memref<40x128xf32, #tpu.memory_space<vmem>>, %arg3: memref<40x128xf32, #tpu.memory_space<vmem>>, %arg4: memref<1x128xf32, #tpu.memory_space<vmem>>, %arg5: memref<1x128xf32, #tpu.memory_space<vmem>>) attributes {dimension_semantics = [#tpu.dimension_semantics<parallel>, #tpu.dimension_semantics<arbitrary>], iteration_bounds = array<i64: 1, 1>, scalar_prefetch = 0 : i64, scratch_operands = 1 : i64, tpu.core_type = #tpu.core_type<tc>, window_params = [{transform_indices = @transform_0, window_bounds = array<i64: 40, 128>}, {transform_indices = @transform_1, window_bounds = array<i64: 40, 128>}, {transform_indices = @transform_2, window_bounds = array<i64: 1, 128>}]} {
    %c0_i32 = arith.constant 0 : i32
    %0 = arith.cmpi eq, %arg1, %c0_i32 : i32
    %1 = arith.extui %0 : i1 to i32
    %c0_i32_0 = arith.constant 0 : i32
    %2 = arith.cmpi ne, %1, %c0_i32_0 : i32
    scf.if %2 {
      %cst_16 = arith.constant 0.000000e+00 : f32
      %32 = vector.broadcast %cst_16 : f32 to vector<1x128xf32>
      %c0_17 = arith.constant 0 : index
      %c0_18 = arith.constant 0 : index
      %33 = vector.load %arg5[%c0_17, %c0_18] : memref<1x128xf32, #tpu.memory_space<vmem>>, vector<1x128xf32>
      tpu.vector_store %arg5[%c0_17, %c0_18], %32 {strides = array<i32>} : memref<1x128xf32, #tpu.memory_space<vmem>>, vector<1x128xf32>,
    } else {
    }
    %c0 = arith.constant 0 : index
    %c0_1 = arith.constant 0 : index
    %3 = vector.load %arg2[%c0, %c0_1] : memref<40x128xf32, #tpu.memory_space<vmem>>, vector<40x128xf32>
    %c0_2 = arith.constant 0 : index
    %c0_3 = arith.constant 0 : index
    %4 = vector.load %arg3[%c0_2, %c0_3] : memref<40x128xf32, #tpu.memory_space<vmem>>, vector<40x128xf32>
    %cst = arith.constant 0.000000e+00 : f32
    %5 = vector.broadcast %cst : f32 to vector<40x128xf32>
    %6 = arith.subf %5, %3 : vector<40x128xf32>
    %cst_4 = arith.constant 0.000000e+00 : f32
    %7 = vector.broadcast %cst_4 : f32 to vector<40x128xf32>
    %8 = arith.maximumf %6, %7 : vector<40x128xf32>
    %9 = math.absf %3 : vector<40x128xf32>
    %cst_5 = arith.constant 0.000000e+00 : f32
    %10 = vector.broadcast %cst_5 : f32 to vector<40x128xf32>
    %11 = arith.subf %10, %9 : vector<40x128xf32>
    %12 = math.exp %11 : vector<40x128xf32>
    %13 = math.log1p %12 : vector<40x128xf32>
    %14 = arith.addf %8, %13 : vector<40x128xf32>
    %cst_6 = arith.constant 1.000000e+00 : f32
    %15 = vector.broadcast %cst_6 : f32 to vector<40x128xf32>
    %16 = arith.subf %15, %4 : vector<40x128xf32>
    %17 = arith.mulf %16, %3 : vector<40x128xf32>
    %cst_7 = arith.constant 0.000000e+00 : f32
    %18 = vector.broadcast %cst_7 : f32 to vector<40x128xf32>
    %19 = arith.mulf %18, %4 : vector<40x128xf32>
    %cst_8 = arith.constant 1.000000e+00 : f32
    %20 = vector.broadcast %cst_8 : f32 to vector<40x128xf32>
    %21 = arith.addf %20, %19 : vector<40x128xf32>
    %22 = arith.mulf %21, %14 : vector<40x128xf32>
    %23 = arith.addf %17, %22 : vector<40x128xf32>
    %c0_9 = arith.constant 0 : index
    %c0_10 = arith.constant 0 : index
    %24 = vector.load %arg5[%c0_9, %c0_10] : memref<1x128xf32, #tpu.memory_space<vmem>>, vector<1x128xf32>
    %cst_11 = arith.constant dense<0.000000e+00> : vector<128xf32>
    %25 = vector.multi_reduction <add>, %23, %cst_11 [0] : vector<40x128xf32> to vector<128xf32>
    %26 = vector.shape_cast %25 : vector<128xf32> to vector<1x128xf32>
    %27 = arith.addf %24, %26 : vector<1x128xf32>
    %c0_12 = arith.constant 0 : index
    %c0_13 = arith.constant 0 : index
    %28 = vector.load %arg5[%c0_12, %c0_13] : memref<1x128xf32, #tpu.memory_space<vmem>>, vector<1x128xf32>
    tpu.vector_store %arg5[%c0_12, %c0_13], %27 {strides = array<i32>} : memref<1x128xf32, #tpu.memory_space<vmem>>, vector<1x128xf32>,
    %c0_i32_14 = arith.constant 0 : i32
    %29 = arith.cmpi eq, %arg1, %c0_i32_14 : i32
    %30 = arith.extui %29 : i1 to i32
    %c0_i32_15 = arith.constant 0 : i32
    %31 = arith.cmpi ne, %30, %c0_i32_15 : i32
    scf.if %31 {
      %c0_16 = arith.constant 0 : index
      %c0_17 = arith.constant 0 : index
      %32 = vector.load %arg5[%c0_16, %c0_17] : memref<1x128xf32, #tpu.memory_space<vmem>>, vector<1x128xf32>
      %c0_18 = arith.constant 0 : index
      %c0_19 = arith.constant 0 : index
      %33 = vector.load %arg4[%c0_18, %c0_19] : memref<1x128xf32, #tpu.memory_space<vmem>>, vector<1x128xf32>
      tpu.vector_store %arg4[%c0_18, %c0_19], %32 {strides = array<i32>} : memref<1x128xf32, #tpu.memory_space<vmem>>, vector<1x128xf32>,
    } else {
    }
    return
  }
  func.func @transform_0(%arg0: i32, %arg1: i32) -> (i32, i32) {
    %c1_i32 = arith.constant 1 : i32
    %0 = arith.muli %arg0, %c1_i32 : i32
    %1 = arith.addi %0, %arg1 : i32
    %c0_i32 = arith.constant 0 : i32
    %c0_i32_0 = arith.constant 0 : i32
    return %1, %c0_i32 : i32, i32
  }
  func.func @transform_1(%arg0: i32, %arg1: i32) -> (i32, i32) {
    %c1_i32 = arith.constant 1 : i32
    %0 = arith.muli %arg0, %c1_i32 : i32
    %1 = arith.addi %0, %arg1 : i32
    %c0_i32 = arith.constant 0 : i32
    %c0_i32_0 = arith.constant 0 : i32
    return %1, %c0_i32 : i32, i32
  }
  func.func @transform_2(%arg0: i32, %arg1: i32) -> (i32, i32) {
    %c0_i32 = arith.constant 0 : i32
    %c0_i32_0 = arith.constant 0 : i32
    return %arg0, %c0_i32 : i32, i32
  }
}

</mosaic_0001>

<llo_original>
// kernel: tpu_custom_call.1
$region0: #{tpu_custom_call.1}
  #allocation0 [shape = 'u32[]', space=smem, size = 0x4, offset = 0x4, fixed_abs, tag = 'smem constant byte address 0x4 - core index']
  #allocation1 [shape = 'u32[72,128]{1,0:T(1,128)}', space=vmem, size = 0x9000, scoped, tag = 'internal scratch']
  #allocation2 [shape = 'f32[1,128]{1,0:T(1,128)}', space=vmem, size = 0x200, scoped, tag = 'scratch operand']
  %s0 = inlined_call_operand.hbm [shape: f32[40,128], index: 0, kind: input, shape index: {}]
  %s1 = inlined_call_operand.hbm [shape: f32[40,128], index: 1, kind: input, shape index: {}]
  %s2 = inlined_call_operand.hbm [shape: f32[1,128], index: 2, kind: output, shape index: {}]
  %s3 = sld [smem:[#allocation0]]
  $region34: #{tpu_custom_call.1} parent=0
    _
  %s5 = ssub.s32 1, %s3
  %s6 = scalar_select 0, %s5, %s3
  $region1: #{tpu_custom_call.1} parent=0
    #allocation3 [shape = 'u8[20480]{0}', space=vmem, size = 0x5000, scoped, tag = 'input window, operand 0, single buffered']
    #allocation4 [shape = 's32[1]{0}', space=sflag, size = 0x4, scoped, tag = 'scoped memory for tpu_custom_call.1']
    #allocation5 [shape = 's32[1]{0}', space=sflag, size = 0x4, scoped, tag = 'scoped memory for tpu_custom_call.1']
    #allocation6 [shape = 'u8[20480]{0}', space=vmem, size = 0x5000, scoped, tag = 'input window, operand 1, single buffered']
    #allocation7 [shape = 's32[1]{0}', space=sflag, size = 0x4, scoped, tag = 'scoped memory for tpu_custom_call.1']
    #allocation8 [shape = 'u8[512]{0}', space=vmem, size = 0x400, scoped, tag = 'output window, operand 0, single buffered']
    %7 = vsyncpa [#allocation4], 0
    %8 = vsyncpa [#allocation7], 0
    %9 = vsyncpa [#allocation5], 0
    // Predicated region
    $region2: #{tpu_custom_call.1} parent=1 // pred_check
      _
    $region3: #{tpu_custom_call.1} parent=1 // pred_check_branch
      %11 = sbr.rel (0) target = $region5
    $region4: #{tpu_custom_call.1} parent=1 // pred_region
      %s12 = sadd.s32 0, 0
      %s13 = smul.u32 5, %s12
      %15 = vsyncadd [#allocation4], 0
      %s16 = smul.addr %s13, 8
      %s17 = scalar_lea.hbm %s0, %s16
      %s18 = sshll.u32 %s17, 4
      %s19 = int_to_ptr.hbm [resolvable:$true] %s18
      %s20 = sshll.u32 [#allocation3], 4
      %s21 = int_to_ptr.vmem [resolvable:$true] %s20
      %26 = dma.hbm_to_vmem [thread:$0]  %s19, 640, %s21, [#allocation4], 128, 128, 8
    $region5: #{tpu_custom_call.1} parent=1 // pred_fallthru
      _
    // Predicated region
    $region6: #{tpu_custom_call.1} parent=1 // pred_check
      _
    $region7: #{tpu_custom_call.1} parent=1 // pred_check_branch
      %28 = sbr.rel (0) target = $region9
    $region8: #{tpu_custom_call.1} parent=1 // pred_region
      %s29 = sadd.s32 0, 0
      %s30 = smul.u32 5, %s29
      %32 = vsyncadd [#allocation7], 0
      %s33 = smul.addr %s30, 8
      %s34 = scalar_lea.hbm %s1, %s33
      %s35 = sshll.u32 %s34, 4
      %s36 = int_to_ptr.hbm [resolvable:$true] %s35
      %s37 = sshll.u32 [#allocation6], 4
      %s38 = int_to_ptr.vmem [resolvable:$true] %s37
      %43 = dma.hbm_to_vmem [thread:$0]  %s36, 640, %s38, [#allocation7], 128, 128, 8
    $region9: #{tpu_custom_call.1} parent=1 // pred_fallthru
      _
    // Predicated region
    $region10: #{tpu_custom_call.1} parent=1 // pred_check
      _
    $region11: #{tpu_custom_call.1} parent=1 // pred_check_branch
      %45 = sbr.rel (0) target = $region13
    $region12: #{tpu_custom_call.1} parent=1 // pred_region
      %47 = dma.done [#allocation4], 640
    $region13: #{tpu_custom_call.1} parent=1 // pred_fallthru
      _
    // Predicated region
    $region14: #{tpu_custom_call.1} parent=1 // pred_check
      _
    $region15: #{tpu_custom_call.1} parent=1 // pred_check_branch
      %49 = sbr.rel (0) target = $region17
    $region16: #{tpu_custom_call.1} parent=1 // pred_region
      %51 = dma.done [#allocation7], 640
    $region17: #{tpu_custom_call.1} parent=1 // pred_fallthru
      _
    %s52 = sadd.s32 0, 0
    %s53 = smul.u32 5, %s52
    %s54 = sadd.s32 0, 0
    %s55 = smul.u32 5, %s54
    %p56 = scmp.eq.s32.totalorder 0, 0
    // Predicated region
    $region18: #{tpu_custom_call.1} parent=1 // pred_check
      %p57 = pneg %p56
    $region19: #{tpu_custom_call.1} parent=1 // pred_check_branch
      %59 = sbr.rel (%p57) target = $region21
    $region20: #{tpu_custom_call.1} parent=1 // pred_region
      %60 = vst [vmem:[#allocation2] sm:$0x1] 0.0
    $region21: #{tpu_custom_call.1} parent=1 // pred_fallthru
      _
    %v61 = vld [vmem:[#allocation3] sm:$0xff]
    %v62 = vld [vmem:[#allocation3 + $0x8] sm:$0xff]
    %v63 = vld [vmem:[#allocation3 + $0x10] sm:$0xff]
    %v64 = vld [vmem:[#allocation3 + $0x18] sm:$0xff]
    %v65 = vld [vmem:[#allocation3 + $0x20] sm:$0xff]
    %v66 = vld [vmem:[#allocation6] sm:$0xff]
    %v67 = vld [vmem:[#allocation6 + $0x8] sm:$0xff]
    %v68 = vld [vmem:[#allocation6 + $0x10] sm:$0xff]
    %v69 = vld [vmem:[#allocation6 + $0x18] sm:$0xff]
    %v70 = vld [vmem:[#allocation6 + $0x20] sm:$0xff]
    %v71 = vsub.f32 0.0, %v61
    %v72 = vsub.f32 0.0, %v62
    %v73 = vsub.f32 0.0, %v63
    %v74 = vsub.f32 0.0, %v64
    %v75 = vsub.f32 0.0, %v65
    %v76 = vmax.f32 %v71, 0.0
    %v77 = vmax.f32 %v72, 0.0
    %v78 = vmax.f32 %v73, 0.0
    %v79 = vmax.f32 %v74, 0.0
    %v80 = vmax.f32 %v75, 0.0
    %v81 = vand.u32 2147483647, %v61
    %v82 = vand.u32 2147483647, %v62
    %v83 = vand.u32 2147483647, %v63
    %v84 = vand.u32 2147483647, %v64
    %v85 = vand.u32 2147483647, %v65
    %v86 = vsub.f32 0.0, %v81
    %v87 = vsub.f32 0.0, %v82
    %v88 = vsub.f32 0.0, %v83
    %v89 = vsub.f32 0.0, %v84
    %v90 = vsub.f32 0.0, %v85
    %v91 = vmul.f32 %v86, 1.442695
    %v92 = vpow.pop %v91
    %v93 = vmul.f32 %v87, 1.442695
    %v94 = vpow.pop %v93
    %v95 = vmul.f32 %v88, 1.442695
    %v96 = vpow.pop %v95
    %v97 = vmul.f32 %v89, 1.442695
    %v98 = vpow.pop %v97
    %v99 = vmul.f32 %v90, 1.442695
    %v100 = vpow.pop %v99
    %v101 = vadd.f32 %v92, 1.0
    %v102 = vlog2.pop %v101
    %v103 = vmul.f32 %v102, 0.6931472
    %v104 = vmul.f32 -0.5, %v92
    %v105 = vadd.f32 %v104, 1.0
    %v106 = vmul.f32 %v105, %v92
    %v107 = vand.u32 2147483647, %v92
    %vm108 = vcmp.lt.f32.partialorder %v107, 0.0004427343
    %v109 = vsel %vm108, %v106, %v103
    %v110 = vadd.f32 %v94, 1.0
    %v111 = vlog2.pop %v110
    %v112 = vmul.f32 %v111, 0.6931472
    %v113 = vmul.f32 -0.5, %v94
    %v114 = vadd.f32 %v113, 1.0
    %v115 = vmul.f32 %v114, %v94
    %v116 = vand.u32 2147483647, %v94
    %vm117 = vcmp.lt.f32.partialorder %v116, 0.0004427343
    %v118 = vsel %vm117, %v115, %v112
    %v119 = vadd.f32 %v96, 1.0
    %v120 = vlog2.pop %v119
    %v121 = vmul.f32 %v120, 0.6931472
    %v122 = vmul.f32 -0.5, %v96
    %v123 = vadd.f32 %v122, 1.0
    %v124 = vmul.f32 %v123, %v96
    %v125 = vand.u32 2147483647, %v96
    %vm126 = vcmp.lt.f32.partialorder %v125, 0.0004427343
    %v127 = vsel %vm126, %v124, %v121
    %v128 = vadd.f32 %v98, 1.0
    %v129 = vlog2.pop %v128
    %v130 = vmul.f32 %v129, 0.6931472
    %v131 = vmul.f32 -0.5, %v98
    %v132 = vadd.f32 %v131, 1.0
    %v133 = vmul.f32 %v132, %v98
    %v134 = vand.u32 2147483647, %v98
    %vm135 = vcmp.lt.f32.partialorder %v134, 0.0004427343
    %v136 = vsel %vm135, %v133, %v130
    %v137 = vadd.f32 %v100, 1.0
    %v138 = vlog2.pop %v137
    %v139 = vmul.f32 %v138, 0.6931472
    %v140 = vmul.f32 -0.5, %v100
    %v141 = vadd.f32 %v140, 1.0
    %v142 = vmul.f32 %v141, %v100
    %v143 = vand.u32 2147483647, %v100
    %vm144 = vcmp.lt.f32.partialorder %v143, 0.0004427343
    %v145 = vsel %vm144, %v142, %v139
    %v146 = vadd.f32 %v76, %v109
    %v147 = vadd.f32 %v77, %v118
    %v148 = vadd.f32 %v78, %v127
    %v149 = vadd.f32 %v79, %v136
    %v150 = vadd.f32 %v80, %v145
    %v151 = vsub.f32 1.0, %v66
    %v152 = vsub.f32 1.0, %v67
    %v153 = vsub.f32 1.0, %v68
    %v154 = vsub.f32 1.0, %v69
    %v155 = vsub.f32 1.0, %v70
    %v156 = vmul.f32 %v151, %v61
    %v157 = vmul.f32 %v152, %v62
    %v158 = vmul.f32 %v153, %v63
    %v159 = vmul.f32 %v154, %v64
    %v160 = vmul.f32 %v155, %v65
    %v161 = vmul.f32 %v66, 0.0
    %v162 = vmul.f32 %v67, 0.0
    %v163 = vmul.f32 %v68, 0.0
    %v164 = vmul.f32 %v69, 0.0
    %v165 = vmul.f32 %v70, 0.0
    %v166 = vadd.f32 %v161, 1.0
    %v167 = vadd.f32 %v162, 1.0
    %v168 = vadd.f32 %v163, 1.0
    %v169 = vadd.f32 %v164, 1.0
    %v170 = vadd.f32 %v165, 1.0
    %v171 = vmul.f32 %v166, %v146
    %v172 = vmul.f32 %v167, %v147
    %v173 = vmul.f32 %v168, %v148
    %v174 = vmul.f32 %v169, %v149
    %v175 = vmul.f32 %v170, %v150
    %v176 = vadd.f32 %v156, %v171
    %v177 = vadd.f32 %v157, %v172
    %v178 = vadd.f32 %v158, %v173
    %v179 = vadd.f32 %v159, %v174
    %v180 = vadd.f32 %v160, %v175
    %v181 = vld [vmem:[#allocation2] sm:$0x1]
    %v182 = vadd.f32 %v176, %v177
    %v183 = vadd.f32 %v182, %v178
    %v184 = vadd.f32 %v183, %v179
    %v185 = vadd.f32 %v184, %v180
    %v186 = vrot.slane %v185, 4
    %v187 = vadd.f32 %v185, %v186
    %v188 = vrot.slane %v187, 2
    %v189 = vadd.f32 %v187, %v188
    %v190 = vrot.slane %v189, 1
    %v191 = vadd.f32 %v189, %v190
    %v192 = vadd.f32 %v181, %v191
    %193 = vst [vmem:[#allocation2] sm:$0x1] %v192
    // Predicated region
    $region22: #{tpu_custom_call.1} parent=1 // pred_check
      %p194 = pneg %p56
    $region23: #{tpu_custom_call.1} parent=1 // pred_check_branch
      %196 = sbr.rel (%p194) target = $region25
    $region24: #{tpu_custom_call.1} parent=1 // pred_region
      %v197 = vld [vmem:[#allocation2] sm:$0x1]
      %198 = vst [vmem:[#allocation8] sm:$0x1] %v197
    $region25: #{tpu_custom_call.1} parent=1 // pred_fallthru
      _
    // Predicated region
    $region26: #{tpu_custom_call.1} parent=1 // pred_check
      _
    $region27: #{tpu_custom_call.1} parent=1 // pred_check_branch
      %200 = sbr.rel (0) target = $region29
    $region28: #{tpu_custom_call.1} parent=1 // pred_region
      %202 = vsyncadd [#allocation5], 0
      %s204 = sshll.u32 [#allocation8], 4
      %s205 = int_to_ptr.vmem [resolvable:$true] %s204
      %s206 = sshll.u32 %s2, 4
      %s207 = int_to_ptr.hbm [resolvable:$true] %s206
      %209 = dma.vmem_to_hbm [thread:$0]  %s205, 16, %s207, [#allocation5]
    $region29: #{tpu_custom_call.1} parent=1 // pred_fallthru
      _
    // Predicated region
    $region30: #{tpu_custom_call.1} parent=1 // pred_check
      _
    $region31: #{tpu_custom_call.1} parent=1 // pred_check_branch
      %211 = sbr.rel (0) target = $region33
    $region32: #{tpu_custom_call.1} parent=1 // pred_region
      %213 = dma.done [#allocation5], 16
    $region33: #{tpu_custom_call.1} parent=1 // pred_fallthru
      _
    %214 = vsyncpa [#allocation4], 1
    %215 = vsyncpa [#allocation7], 1
    %216 = vsyncpa [#allocation5], 1

</llo_original>
